<compile_context>
chip_gen: v7x
topology: tpu7x:2x2x1
jax: 0.10.0
libtpu: 0.0.40
codegen_flags: <defaults>
</compile_context>

<pallas_src>
import functools

import jax
import jax.numpy as jnp
import numpy as np
from jax.experimental import pallas as pl
from jax.experimental.pallas import tpu as pltpu


def _conv_block_kernel(x_ref, w_ref, ss_ref, o_ref, *,
                       offsets, n_batch, hw):
    """Single invocation: the whole (channel-padded) batch lives in VMEM.

    x_ref:  (N, Cin_pad, H*W) f32  flattened, channel-padded NCHW images
    w_ref:  (Cout, T*Cin_pad) f32  im2col weights, rows ordered (kh, kw, ci)
    ss_ref: (Cout, 2)         f32  [:, 0] = BN scale, [:, 1] = BN shift
    o_ref:  (N, Cout, H*W)         full-frame output (wrapper crops to OHxOW)
    """
    # Build the im2col matrix in registers: tap (kh, kw) needs the image
    # left-shifted by off = kh*W + kw lanes, i.e. a roll by (hw - off).
    # Wrapped tail columns only feed cropped output positions (see header),
    # so no masking is required.
    blocks = []
    for n in range(n_batch):
        x2d = x_ref[n, :, :]                                # (Cin_pad, HW)
        taps = []
        for off in offsets:
            if off == 0:
                taps.append(x2d)
            else:
                taps.append(pltpu.roll(x2d, hw - off, 1))   # XLU lane rotate
        blocks.append(jnp.concatenate(taps, axis=0))        # (T*Cin_pad, HW)
    b = jnp.concatenate(blocks, axis=1)                     # (T*Cin_pad, N*HW)

    # Single MXU matmul: (Cout, T*Cin_pad) @ (T*Cin_pad, N*HW) -> (Cout, N*HW).
    acc = jnp.dot(w_ref[...], b, preferred_element_type=jnp.float32)

    # ReLU, then eval-mode BatchNorm folded to a per-channel affine
    # (channels on sublanes, so scale/shift broadcast over lanes).
    y = jnp.maximum(acc, 0.0)
    y = y * ss_ref[:, 0:1] + ss_ref[:, 1:2]
    # Dropout(p=0.05): identity in eval mode.
    # TODO(synk): train-mode (stochastic dropout, batch-stat BN) not emulated.

    y = y.astype(o_ref.dtype)
    for n in range(n_batch):
        # Lane-aligned (multiple-of-128) slices -> unmasked full-width stores.
        o_ref[n, :, :] = y[:, n * hw:(n + 1) * hw]


def conv2d_block(x_nchw, weight_oihw, gamma, beta, running_mean, running_var,
                 *, eps=1e-5):
    """Pallas implementation of Conv2dBlock.forward (eval mode).

    Module defaults: kernel_size=3, padding=0, stride=1, dilation=1, no bias.
    The full-frame-shift im2col below is only valid for padding=0, stride=1,
    dilation=1 (the module's defaults).
    """
    n, cin, h, w = x_nchw.shape
    cout, cin_w, kh, kw = weight_oihw.shape
    assert cin == cin_w
    oh, ow = h - kh + 1, w - kw + 1          # padding=0, stride=1, dilation=1
    hw = h * w
    ntaps = kh * kw
    cin_pad = -(-cin // 8) * 8               # sublane-tile aligned tap blocks

    # NCHW consumed directly; flatten spatial dims (free) and zero-pad channels
    # so each tap block starts on an 8-row sublane-tile boundary.
    x_flat = x_nchw.reshape(n, cin, hw)
    x_pad = jnp.pad(x_flat, ((0, 0), (0, cin_pad - cin), (0, 0)))

    # (Cout, Cin, KH, KW) -> (Cout, KH*KW*Cin_pad), rows ordered (kh, kw, ci),
    # with zero rows for the channel padding.  Tiny; done once outside.
    w_perm = jnp.transpose(weight_oihw, (0, 2, 3, 1))          # (Cout,KH,KW,Cin)
    w_perm = jnp.pad(w_perm, ((0, 0), (0, 0), (0, 0), (0, cin_pad - cin)))
    w2d = w_perm.reshape(cout, ntaps * cin_pad)

    # Fold BatchNorm eval stats into a per-channel affine; one tiny DMA.
    inv_std = jax.lax.rsqrt(running_var + eps)
    scale = gamma * inv_std
    shift = beta - running_mean * scale
    ss = jnp.stack([scale, shift], axis=1)                     # (Cout, 2)

    offsets = tuple(i * w + j for i in range(kh) for j in range(kw))
    kernel = functools.partial(_conv_block_kernel, offsets=offsets,
                               n_batch=n, hw=hw)

    flops = 2 * n * cout * ntaps * cin * hw
    bytes_accessed = 4 * (n * cin_pad * hw + cout * ntaps * cin_pad
                          + cout * 2 + n * cout * hw)

    out_flat = pl.pallas_call(
        kernel,
        out_shape=jax.ShapeDtypeStruct((n, cout, hw), x_nchw.dtype),
        grid_spec=pltpu.PrefetchScalarGridSpec(
            num_scalar_prefetch=0,
            grid=(1,),                       # single fused invocation
            in_specs=[
                pl.BlockSpec((n, cin_pad, hw), lambda i: (0, 0, 0)),
                pl.BlockSpec((cout, ntaps * cin_pad), lambda i: (0, 0)),
                pl.BlockSpec((cout, 2), lambda i: (0, 0)),
            ],
            out_specs=pl.BlockSpec((n, cout, hw), lambda i: (0, 0, 0)),
        ),
        compiler_params=pltpu.CompilerParams(
            dimension_semantics=("arbitrary",)),
        cost_estimate=pl.CostEstimate(flops=flops, transcendentals=0,
                                      bytes_accessed=bytes_accessed),
    )(x_pad, w2d, ss)

    # Lane-dense (H*W) slab -> NCHW 4-D, then crop the valid conv window.
    # (If this fed another lane-major Pallas kernel, keep the full slab.)
    return out_flat.reshape(n, cout, h, w)[:, :, :oh, :ow]


def _reference(x_nchw, weight_oihw, gamma, beta, mean, var, eps=1e-5):
    y = jax.lax.conv_general_dilated(
        x_nchw, weight_oihw, window_strides=(1, 1), padding="VALID",
        dimension_numbers=("NCHW", "OIHW", "NCHW"))
    y = jnp.maximum(y, 0.0)
    c = y.shape[1]
    y = (y - mean.reshape(1, c, 1, 1)) / jnp.sqrt(var.reshape(1, c, 1, 1) + eps)
    y = y * gamma.reshape(1, c, 1, 1) + beta.reshape(1, c, 1, 1)
    return y  # dropout is identity in eval mode


if __name__ == "__main__":
    # Small shapes consistent with the module: batch=2, in_channels=4,
    # out_channels=8, spatial=16, kernel_size=3.
    N, CIN, COUT, H, W, K = 2, 4, 8, 16, 16, 3

    key = jax.random.PRNGKey(0)
    kx, kw_, kg, kb, km, kv = jax.random.split(key, 6)

    x = jax.random.normal(kx, (N, CIN, H, W), dtype=jnp.float32)
    weight = jax.random.normal(kw_, (COUT, CIN, K, K), dtype=jnp.float32) * 0.1
    gamma = 1.0 + 0.1 * jax.random.normal(kg, (COUT,), dtype=jnp.float32)
    beta = 0.1 * jax.random.normal(kb, (COUT,), dtype=jnp.float32)
    running_mean = 0.1 * jax.random.normal(km, (COUT,), dtype=jnp.float32)
    running_var = jnp.abs(jax.random.normal(kv, (COUT,), dtype=jnp.float32)) + 0.5

    out = conv2d_block(x, weight, gamma, beta, running_mean, running_var)
    out = jax.block_until_ready(out)

    ref = _reference(x, weight, gamma, beta, running_mean, running_var)
    np.testing.assert_allclose(np.asarray(out), np.asarray(ref),
                               rtol=1e-4, atol=1e-4)

    print("KERNEL_OK")
</pallas_src>

<mosaic_0001>
module attributes {stable_mosaic.version = 11 : i64} {
  func.func @_conv_block_kernel(%arg0: i32, %arg1: memref<2x8x256xf32, #tpu.memory_space<vmem>>, %arg2: memref<8x72xf32, #tpu.memory_space<vmem>>, %arg3: memref<8x2xf32, #tpu.memory_space<vmem>>, %arg4: memref<2x8x256xf32, #tpu.memory_space<vmem>>) attributes {dimension_semantics = [#tpu.dimension_semantics<arbitrary>], iteration_bounds = array<i64: 1>, scalar_prefetch = 0 : i64, scratch_operands = 0 : i64, tpu.core_type = #tpu.core_type<tc>, window_params = [{pipeline_mode = #tpu.pipeline_mode<synchronous>, transform_indices = @transform_0, window_bounds = array<i64: 2, 8, 256>}, {pipeline_mode = #tpu.pipeline_mode<synchronous>, transform_indices = @transform_1, window_bounds = array<i64: 8, 72>}, {pipeline_mode = #tpu.pipeline_mode<synchronous>, transform_indices = @transform_2, window_bounds = array<i64: 8, 2>}, {pipeline_mode = #tpu.pipeline_mode<synchronous>, transform_indices = @transform_3, window_bounds = array<i64: 2, 8, 256>}]} {
    %c0 = arith.constant 0 : index
    %c0_0 = arith.constant 0 : index
    %c0_1 = arith.constant 0 : index
    %0 = vector.load %arg1[%c0, %c0_0, %c0_1] : memref<2x8x256xf32, #tpu.memory_space<vmem>>, vector<1x8x256xf32>
    %1 = vector.shape_cast %0 : vector<1x8x256xf32> to vector<8x256xf32>
    %c255_i32 = arith.constant 255 : i32
    %2 = tpu.dynamic_rotate %1 by %c255_i32 dim 1 : vector<8x256xf32>, i32 -> vector<8x256xf32>
    %c254_i32 = arith.constant 254 : i32
    %3 = tpu.dynamic_rotate %1 by %c254_i32 dim 1 : vector<8x256xf32>, i32 -> vector<8x256xf32>
    %c240_i32 = arith.constant 240 : i32
    %4 = tpu.dynamic_rotate %1 by %c240_i32 dim 1 : vector<8x256xf32>, i32 -> vector<8x256xf32>
    %c239_i32 = arith.constant 239 : i32
    %5 = tpu.dynamic_rotate %1 by %c239_i32 dim 1 : vector<8x256xf32>, i32 -> vector<8x256xf32>
    %c238_i32 = arith.constant 238 : i32
    %6 = tpu.dynamic_rotate %1 by %c238_i32 dim 1 : vector<8x256xf32>, i32 -> vector<8x256xf32>
    %c224_i32 = arith.constant 224 : i32
    %7 = tpu.dynamic_rotate %1 by %c224_i32 dim 1 : vector<8x256xf32>, i32 -> vector<8x256xf32>
    %c223_i32 = arith.constant 223 : i32
    %8 = tpu.dynamic_rotate %1 by %c223_i32 dim 1 : vector<8x256xf32>, i32 -> vector<8x256xf32>
    %c222_i32 = arith.constant 222 : i32
    %9 = tpu.dynamic_rotate %1 by %c222_i32 dim 1 : vector<8x256xf32>, i32 -> vector<8x256xf32>
    %10 = tpu.concatenate %1, %2, %3, %4, %5, %6, %7, %8, %9 in 0 : vector<8x256xf32>, vector<8x256xf32>, vector<8x256xf32>, vector<8x256xf32>, vector<8x256xf32>, vector<8x256xf32>, vector<8x256xf32>, vector<8x256xf32>, vector<8x256xf32> -> vector<72x256xf32>
    %c1 = arith.constant 1 : index
    %c0_2 = arith.constant 0 : index
    %c0_3 = arith.constant 0 : index
    %11 = vector.load %arg1[%c1, %c0_2, %c0_3] : memref<2x8x256xf32, #tpu.memory_space<vmem>>, vector<1x8x256xf32>
    %12 = vector.shape_cast %11 : vector<1x8x256xf32> to vector<8x256xf32>
    %c255_i32_4 = arith.constant 255 : i32
    %13 = tpu.dynamic_rotate %12 by %c255_i32_4 dim 1 : vector<8x256xf32>, i32 -> vector<8x256xf32>
    %c254_i32_5 = arith.constant 254 : i32
    %14 = tpu.dynamic_rotate %12 by %c254_i32_5 dim 1 : vector<8x256xf32>, i32 -> vector<8x256xf32>
    %c240_i32_6 = arith.constant 240 : i32
    %15 = tpu.dynamic_rotate %12 by %c240_i32_6 dim 1 : vector<8x256xf32>, i32 -> vector<8x256xf32>
    %c239_i32_7 = arith.constant 239 : i32
    %16 = tpu.dynamic_rotate %12 by %c239_i32_7 dim 1 : vector<8x256xf32>, i32 -> vector<8x256xf32>
    %c238_i32_8 = arith.constant 238 : i32
    %17 = tpu.dynamic_rotate %12 by %c238_i32_8 dim 1 : vector<8x256xf32>, i32 -> vector<8x256xf32>
    %c224_i32_9 = arith.constant 224 : i32
    %18 = tpu.dynamic_rotate %12 by %c224_i32_9 dim 1 : vector<8x256xf32>, i32 -> vector<8x256xf32>
    %c223_i32_10 = arith.constant 223 : i32
    %19 = tpu.dynamic_rotate %12 by %c223_i32_10 dim 1 : vector<8x256xf32>, i32 -> vector<8x256xf32>
    %c222_i32_11 = arith.constant 222 : i32
    %20 = tpu.dynamic_rotate %12 by %c222_i32_11 dim 1 : vector<8x256xf32>, i32 -> vector<8x256xf32>
    %21 = tpu.concatenate %12, %13, %14, %15, %16, %17, %18, %19, %20 in 0 : vector<8x256xf32>, vector<8x256xf32>, vector<8x256xf32>, vector<8x256xf32>, vector<8x256xf32>, vector<8x256xf32>, vector<8x256xf32>, vector<8x256xf32>, vector<8x256xf32> -> vector<72x256xf32>
    %22 = tpu.concatenate %10, %21 in 1 : vector<72x256xf32>, vector<72x256xf32> -> vector<72x512xf32>
    %c0_12 = arith.constant 0 : index
    %c0_13 = arith.constant 0 : index
    %23 = vector.load %arg2[%c0_12, %c0_13] : memref<8x72xf32, #tpu.memory_space<vmem>>, vector<8x72xf32>
    %cst = arith.constant dense<0.000000e+00> : vector<8x512xf32>
    %24 = tpu.matmul %23, %22, %cst {dimension_numbers = #tpu.dot_dimension_numbers<[1], [0], [0], [1], [0, 0, 1, 1], [], []>} : vector<8x72xf32>, vector<72x512xf32>, vector<8x512xf32> -> vector<8x512xf32>
    %cst_14 = arith.constant 0.000000e+00 : f32
    %25 = vector.broadcast %cst_14 : f32 to vector<8x512xf32>
    %26 = arith.maximumf %24, %25 : vector<8x512xf32>
    %c0_15 = arith.constant 0 : index
    %c0_16 = arith.constant 0 : index
    %27 = vector.load %arg3[%c0_15, %c0_16] : memref<8x2xf32, #tpu.memory_space<vmem>>, vector<8x1xf32>
    %28 = vector.broadcast %27 : vector<8x1xf32> to vector<8x512xf32>
    %29 = arith.mulf %26, %28 : vector<8x512xf32>
    %c0_17 = arith.constant 0 : index
    %c1_18 = arith.constant 1 : index
    %30 = vector.load %arg3[%c0_17, %c1_18] : memref<8x2xf32, #tpu.memory_space<vmem>>, vector<8x1xf32>
    %31 = vector.broadcast %30 : vector<8x1xf32> to vector<8x512xf32>
    %32 = arith.addf %29, %31 : vector<8x512xf32>
    %33 = vector.extract_strided_slice %32 {offsets = [0, 0], sizes = [8, 256], strides = [1, 1]} : vector<8x512xf32> to vector<8x256xf32>
    %c0_19 = arith.constant 0 : index
    %c0_20 = arith.constant 0 : index
    %c0_21 = arith.constant 0 : index
    %34 = vector.load %arg4[%c0_19, %c0_20, %c0_21] : memref<2x8x256xf32, #tpu.memory_space<vmem>>, vector<1x8x256xf32>
    %35 = vector.shape_cast %34 : vector<1x8x256xf32> to vector<8x256xf32>
    %36 = vector.shape_cast %33 : vector<8x256xf32> to vector<1x8x256xf32>
    tpu.vector_store %arg4[%c0_19, %c0_20, %c0_21], %36 {strides = array<i32>} : memref<2x8x256xf32, #tpu.memory_space<vmem>>, vector<1x8x256xf32>,
    %37 = vector.extract_strided_slice %32 {offsets = [0, 256], sizes = [8, 256], strides = [1, 1]} : vector<8x512xf32> to vector<8x256xf32>
    %c1_22 = arith.constant 1 : index
    %c0_23 = arith.constant 0 : index
    %c0_24 = arith.constant 0 : index
    %38 = vector.load %arg4[%c1_22, %c0_23, %c0_24] : memref<2x8x256xf32, #tpu.memory_space<vmem>>, vector<1x8x256xf32>
    %39 = vector.shape_cast %38 : vector<1x8x256xf32> to vector<8x256xf32>
    %40 = vector.shape_cast %37 : vector<8x256xf32> to vector<1x8x256xf32>
    tpu.vector_store %arg4[%c1_22, %c0_23, %c0_24], %40 {strides = array<i32>} : memref<2x8x256xf32, #tpu.memory_space<vmem>>, vector<1x8x256xf32>,
    return
  }
  func.func @transform_0(%arg0: i32) -> (i32, i32, i32) {
    %c0_i32 = arith.constant 0 : i32
    %c0_i32_0 = arith.constant 0 : i32
    %c0_i32_1 = arith.constant 0 : i32
    %c0_i32_2 = arith.constant 0 : i32
    return %c0_i32, %c0_i32_0, %c0_i32_1 : i32, i32, i32
  }
  func.func @transform_1(%arg0: i32) -> (i32, i32) {
    %c0_i32 = arith.constant 0 : i32
    %c0_i32_0 = arith.constant 0 : i32
    %c0_i32_1 = arith.constant 0 : i32
    return %c0_i32, %c0_i32_0 : i32, i32
  }
  func.func @transform_2(%arg0: i32) -> (i32, i32) {
    %c0_i32 = arith.constant 0 : i32
    %c0_i32_0 = arith.constant 0 : i32
    %c0_i32_1 = arith.constant 0 : i32
    return %c0_i32, %c0_i32_0 : i32, i32
  }
  func.func @transform_3(%arg0: i32) -> (i32, i32, i32) {
    %c0_i32 = arith.constant 0 : i32
    %c0_i32_0 = arith.constant 0 : i32
    %c0_i32_1 = arith.constant 0 : i32
    %c0_i32_2 = arith.constant 0 : i32
    return %c0_i32, %c0_i32_0, %c0_i32_1 : i32, i32, i32
  }
}

</mosaic_0001>

<llo_original>
// kernel: tpu_custom_call.1
$region0: #{tpu_custom_call.1}
  #allocation0 [shape = 'u32[]', space=smem, size = 0x4, offset = 0x4, fixed_abs, tag = 'smem constant byte address 0x4 - core index']
  #allocation1 [shape = 'u32[144,128]{1,0:T(1,128)}', space=vmem, size = 0x12000, scoped, tag = 'internal scratch']
  %s0 = inlined_call_operand.hbm [shape: f32[2,8,256], index: 0, kind: input, shape index: {}]
  %s1 = inlined_call_operand.vmem [shape: f32[8,72], index: 1, kind: input, shape index: {}]
  %s2 = inlined_call_operand.vmem [shape: f32[8,2], index: 2, kind: input, shape index: {}]
  %s3 = inlined_call_operand.hbm [shape: f32[2,8,256], index: 3, kind: output, shape index: {}]
  %s4 = sld [smem:[#allocation0]]
  $region26: #{tpu_custom_call.1} parent=0
    _
  %s6 = ssub.s32 1, %s4
  %s7 = scalar_select 0, %s6, %s4
  $region1: #{tpu_custom_call.1} parent=0
    #allocation2 [shape = 'u8[16384]{0}', space=vmem, size = 0x4000, scoped, tag = 'input window, operand 0, single buffered']
    #allocation3 [shape = 's32[1]{0}', space=sflag, size = 0x4, scoped, tag = 'scoped memory for tpu_custom_call.1']
    #allocation4 [shape = 's32[1]{0}', space=sflag, size = 0x4, scoped, tag = 'scoped memory for tpu_custom_call.1']
    #allocation5 [shape = 'u8[16384]{0}', space=vmem, size = 0x4000, scoped, tag = 'output window, operand 0, single buffered']
    %8 = vsyncpa [#allocation3], 0
    %9 = vsyncpa [#allocation4], 0
    // Predicated region
    $region2: #{tpu_custom_call.1} parent=1 // pred_check
      _
    $region3: #{tpu_custom_call.1} parent=1 // pred_check_branch
      %11 = sbr.rel (0) target = $region5
    $region4: #{tpu_custom_call.1} parent=1 // pred_region
      %s13 = ssub.s32 512, 512
      %14 = vsyncadd [#allocation3], %s13
      %s15 = sshll.u32 [#allocation2], 4
      %s16 = int_to_ptr.vmem [resolvable:$true] %s15
      %21 = dma.hbm_to_vmem [thread:$0]  %s0, 512, %s16, [#allocation3], 256, 256, 16
    $region5: #{tpu_custom_call.1} parent=1 // pred_fallthru
      _
    // Predicated region
    $region6: #{tpu_custom_call.1} parent=1 // pred_check
      _
    $region7: #{tpu_custom_call.1} parent=1 // pred_check_branch
      %23 = sbr.rel (0) target = $region9
    $region8: #{tpu_custom_call.1} parent=1 // pred_region
      _
    $region9: #{tpu_custom_call.1} parent=1 // pred_fallthru
      _
    // Predicated region
    $region10: #{tpu_custom_call.1} parent=1 // pred_check
      _
    $region11: #{tpu_custom_call.1} parent=1 // pred_check_branch
      %25 = sbr.rel (0) target = $region13
    $region12: #{tpu_custom_call.1} parent=1 // pred_region
      _
    $region13: #{tpu_custom_call.1} parent=1 // pred_fallthru
      _
    // Predicated region
    $region14: #{tpu_custom_call.1} parent=1 // pred_check
      _
    $region15: #{tpu_custom_call.1} parent=1 // pred_check_branch
      %27 = sbr.rel (0) target = $region17
    $region16: #{tpu_custom_call.1} parent=1 // pred_region
      %28 = dma.done [#allocation3], 512
    $region17: #{tpu_custom_call.1} parent=1 // pred_fallthru
      _
    %v29 = vld [vmem:[#allocation2] sm:$0xff]
    %v30 = vld [vmem:[#allocation2 + $0x8] sm:$0xff]
    %31 = vrot.lane.b32.xlu0 %v29, 127
    %v32 = vpop.permute.xlu0 %31
    %33 = vrot.lane.b32.xlu0 %v30, 127
    %v34 = vpop.permute.xlu0 %33
    %v35 = vlaneseq
    %v36 = vand.u32 %v35, 127
    %vm37 = vcmp.lt.s32.totalorder %v36, 127
    %v38 = vsel %vm37, %v32, %v34
    %v39 = vsel %vm37, %v34, %v32
    %40 = vrot.lane.b32.xlu0 %v29, 126
    %v41 = vpop.permute.xlu0 %40
    %42 = vrot.lane.b32.xlu0 %v30, 126
    %v43 = vpop.permute.xlu0 %42
    %vm44 = vcmp.lt.s32.totalorder %v36, 126
    %v45 = vsel %vm44, %v41, %v43
    %v46 = vsel %vm44, %v43, %v41
    %47 = vrot.lane.b32.xlu0 %v29, 112
    %v48 = vpop.permute.xlu0 %47
    %49 = vrot.lane.b32.xlu0 %v30, 112
    %v50 = vpop.permute.xlu0 %49
    %vm51 = vcmp.lt.s32.totalorder %v36, 112
    %v52 = vsel %vm51, %v48, %v50
    %v53 = vsel %vm51, %v50, %v48
    %54 = vrot.lane.b32.xlu0 %v29, 111
    %v55 = vpop.permute.xlu0 %54
    %56 = vrot.lane.b32.xlu0 %v30, 111
    %v57 = vpop.permute.xlu0 %56
    %vm58 = vcmp.lt.s32.totalorder %v36, 111
    %v59 = vsel %vm58, %v55, %v57
    %v60 = vsel %vm58, %v57, %v55
    %61 = vrot.lane.b32.xlu0 %v29, 110
    %v62 = vpop.permute.xlu0 %61
    %63 = vrot.lane.b32.xlu0 %v30, 110
    %v64 = vpop.permute.xlu0 %63
    %vm65 = vcmp.lt.s32.totalorder %v36, 110
    %v66 = vsel %vm65, %v62, %v64
    %v67 = vsel %vm65, %v64, %v62
    %68 = vrot.lane.b32.xlu0 %v29, 96
    %v69 = vpop.permute.xlu0 %68
    %70 = vrot.lane.b32.xlu0 %v30, 96
    %v71 = vpop.permute.xlu0 %70
    %vm72 = vcmp.lt.s32.totalorder %v36, 96
    %v73 = vsel %vm72, %v69, %v71
    %v74 = vsel %vm72, %v71, %v69
    %75 = vrot.lane.b32.xlu0 %v29, 95
    %v76 = vpop.permute.xlu0 %75
    %77 = vrot.lane.b32.xlu0 %v30, 95
    %v78 = vpop.permute.xlu0 %77
    %vm79 = vcmp.lt.s32.totalorder %v36, 95
    %v80 = vsel %vm79, %v76, %v78
    %v81 = vsel %vm79, %v78, %v76
    %82 = vrot.lane.b32.xlu0 %v29, 94
    %v83 = vpop.permute.xlu0 %82
    %84 = vrot.lane.b32.xlu0 %v30, 94
    %v85 = vpop.permute.xlu0 %84
    %vm86 = vcmp.lt.s32.totalorder %v36, 94
    %v87 = vsel %vm86, %v83, %v85
    %v88 = vsel %vm86, %v85, %v83
    %s89 = scalar_lea.vmem [#allocation2], 16
    %v90 = vld [vmem:[%s89] sm:$0xff]
    %v91 = vld [vmem:[%s89 + $0x8] sm:$0xff]
    %92 = vrot.lane.b32.xlu0 %v90, 127
    %v93 = vpop.permute.xlu0 %92
    %94 = vrot.lane.b32.xlu0 %v91, 127
    %v95 = vpop.permute.xlu0 %94
    %v96 = vsel %vm37, %v93, %v95
    %v97 = vsel %vm37, %v95, %v93
    %98 = vrot.lane.b32.xlu0 %v90, 126
    %v99 = vpop.permute.xlu0 %98
    %100 = vrot.lane.b32.xlu0 %v91, 126
    %v101 = vpop.permute.xlu0 %100
    %v102 = vsel %vm44, %v99, %v101
    %v103 = vsel %vm44, %v101, %v99
    %104 = vrot.lane.b32.xlu0 %v90, 112
    %v105 = vpop.permute.xlu0 %104
    %106 = vrot.lane.b32.xlu0 %v91, 112
    %v107 = vpop.permute.xlu0 %106
    %v108 = vsel %vm51, %v105, %v107
    %v109 = vsel %vm51, %v107, %v105
    %110 = vrot.lane.b32.xlu0 %v90, 111
    %v111 = vpop.permute.xlu0 %110
    %112 = vrot.lane.b32.xlu0 %v91, 111
    %v113 = vpop.permute.xlu0 %112
    %v114 = vsel %vm58, %v111, %v113
    %v115 = vsel %vm58, %v113, %v111
    %116 = vrot.lane.b32.xlu0 %v90, 110
    %v117 = vpop.permute.xlu0 %116
    %118 = vrot.lane.b32.xlu0 %v91, 110
    %v119 = vpop.permute.xlu0 %118
    %v120 = vsel %vm65, %v117, %v119
    %v121 = vsel %vm65, %v119, %v117
    %122 = vrot.lane.b32.xlu0 %v90, 96
    %v123 = vpop.permute.xlu0 %122
    %124 = vrot.lane.b32.xlu0 %v91, 96
    %v125 = vpop.permute.xlu0 %124
    %v126 = vsel %vm72, %v123, %v125
    %v127 = vsel %vm72, %v125, %v123
    %128 = vrot.lane.b32.xlu0 %v90, 95
    %v129 = vpop.permute.xlu0 %128
    %130 = vrot.lane.b32.xlu0 %v91, 95
    %v131 = vpop.permute.xlu0 %130
    %v132 = vsel %vm79, %v129, %v131
    %v133 = vsel %vm79, %v131, %v129
    %134 = vrot.lane.b32.xlu0 %v90, 94
    %v135 = vpop.permute.xlu0 %134
    %136 = vrot.lane.b32.xlu0 %v91, 94
    %v137 = vpop.permute.xlu0 %136
    %v138 = vsel %vm86, %v135, %v137
    %v139 = vsel %vm86, %v137, %v135
    %v140 = vld [vmem:[%s1] sm:$0xff]
    %vm141 = vcmask 588800
    %v143 = vsel %vm141, %v140, 0
    %145 = vmatprep.subr.mxu0 %v30
    %146 = vmatpush1.msra.mxu0 %v29
    %147 = vmatprep.subr.mxu0 %v39
    %148 = vmatpush1.msra.mxu0 %v38
    %149 = vmatprep.subr.mxu0 %v46
    %150 = vmatpush1.msra.mxu0 %v45
    %151 = vmatprep.subr.mxu0 %v53
    %152 = vmatpush1.msra.mxu0 %v52
    %153 = vmatprep.subr.mxu0 %v60
    %154 = vmatpush1.msra.mxu0 %v59
    %155 = vmatprep.subr.mxu0 %v67
    %156 = vmatpush1.msra.mxu0 %v66
    %157 = vmatprep.subr.mxu0 %v74
    %158 = vmatpush1.msra.mxu0 %v73
    %159 = vmatprep.subr.mxu0 %v81
    %160 = vmatpush1.msra.mxu0 %v80
    %161 = vmatprep.subr.mxu0 %v88
    %162 = vmatpush1.msra.mxu0 %v87
    %163 = vmatprep.subr.mxu0 0.0
    %164 = vmatpush1.msra.mxu0 0.0
    %165 = vmatprep.subr.mxu0 0.0
    %166 = vmatpush1.msra.mxu0 0.0
    %167 = vmatprep.subr.mxu0 0.0
    %168 = vmatpush1.msra.mxu0 0.0
    %169 = vmatprep.subr.mxu0 0.0
    %170 = vmatpush1.msra.mxu0 0.0
    %171 = vmatprep.subr.mxu0 0.0
    %172 = vmatpush1.msra.mxu0 0.0
    %173 = vmatprep.subr.mxu0 0.0
    %174 = vmatpush1.msra.mxu0 0.0
    %175 = vmatprep.subr.mxu0 0.0
    %176 = vmatpush1.msra.mxu0 0.0
    %177 = vmatprep.subr.mxu0 0.0
    %178 = vmatpush1.msra.mxu0 0.0
    %179 = vmatprep.subr.mxu0 0.0
    %180 = vmatpush1.msra.mxu0 0.0
    %181 = vmatprep.subr.mxu0 0.0
    %182 = vmatpush1.msra.mxu0 0.0
    %183 = vmatprep.subr.mxu0 0.0
    %184 = vmatpush1.msra.mxu0 0.0
    %185 = vmatprep.subr.mxu0 0.0
    %186 = vmatpush1.msra.mxu0 0.0
    %187 = vmatprep.subr.mxu0 0.0
    %188 = vmatpush1.msra.mxu0 0.0
    %189 = vmatprep.subr.mxu0 0.0
    %190 = vmatpush1.msra.mxu0 0.0
    %191 = vmatprep.subr.mxu0 0.0
    %192 = vmatpush1.msra.mxu0 0.0
    %193 = vmatprep.subr.mxu0 0.0
    %194 = vmatpush1.msra.mxu0 0.0
    %195 = vmatprep.subr.mxu0 0.0
    %196 = vmatpush1.msra.mxu0 0.0
    %197 = vmatprep.subr.mxu0 0.0
    %198 = vmatpush1.msra.mxu0 0.0
    %199 = vmatprep.subr.mxu0 0.0
    %200 = vmatpush1.msra.mxu0 0.0
    %201 = vmatprep.subr.mxu0 0.0
    %202 = vmatpush1.msra.mxu0 0.0
    %203 = vmatprep.subr.mxu0 0.0
    %204 = vmatpush1.msra.mxu0 0.0
    %205 = vmatprep.subr.mxu0 0.0
    %206 = vmatpush1.msra.mxu0 0.0
    %207 = vmatprep.subr.mxu0 0.0
    %208 = vmatpush1.msra.mxu0 0.0
    %209 = vmatprep.mubr.f32.mxu0 0.0
    %210 = vmatmul.mubr.f32.gmra.mrb[0].mxu0 %v143
    %v211 = vpop.f32.mrb[0].mxu0
    %v212 = vadd.f32 0.0, %v211
    %v213 = vpop.f32.mrb[0].mxu0
    %v214 = vadd.f32 0.0, %v213
    %215 = vdwg.mxu0
    %216 = vmatprep.subr.mxu0 %v91
    %217 = vmatpush1.msra.mxu0 %v90
    %218 = vmatprep.subr.mxu0 %v97
    %219 = vmatpush1.msra.mxu0 %v96
    %220 = vmatprep.subr.mxu0 %v103
    %221 = vmatpush1.msra.mxu0 %v102
    %222 = vmatprep.subr.mxu0 %v109
    %223 = vmatpush1.msra.mxu0 %v108
    %224 = vmatprep.subr.mxu0 %v115
    %225 = vmatpush1.msra.mxu0 %v114
    %226 = vmatprep.subr.mxu0 %v121
    %227 = vmatpush1.msra.mxu0 %v120
    %228 = vmatprep.subr.mxu0 %v127
    %229 = vmatpush1.msra.mxu0 %v126
    %230 = vmatprep.subr.mxu0 %v133
    %231 = vmatpush1.msra.mxu0 %v132
    %232 = vmatprep.subr.mxu0 %v139
    %233 = vmatpush1.msra.mxu0 %v138
    %234 = vmatprep.subr.mxu0 0.0
    %235 = vmatpush1.msra.mxu0 0.0
    %236 = vmatprep.subr.mxu0 0.0
    %237 = vmatpush1.msra.mxu0 0.0
    %238 = vmatprep.subr.mxu0 0.0
    %239 = vmatpush1.msra.mxu0 0.0
    %240 = vmatprep.subr.mxu0 0.0
    %241 = vmatpush1.msra.mxu0 0.0
    %242 = vmatprep.subr.mxu0 0.0
    %243 = vmatpush1.msra.mxu0 0.0
    %244 = vmatprep.subr.mxu0 0.0
    %245 = vmatpush1.msra.mxu0 0.0
    %246 = vmatprep.subr.mxu0 0.0
    %247 = vmatpush1.msra.mxu0 0.0
    %248 = vmatprep.subr.mxu0 0.0
    %249 = vmatpush1.msra.mxu0 0.0
    %250 = vmatprep.subr.mxu0 0.0
    %251 = vmatpush1.msra.mxu0 0.0
    %252 = vmatprep.subr.mxu0 0.0
    %253 = vmatpush1.msra.mxu0 0.0
    %254 = vmatprep.subr.mxu0 0.0
    %255 = vmatpush1.msra.mxu0 0.0
    %256 = vmatprep.subr.mxu0 0.0
    %257 = vmatpush1.msra.mxu0 0.0
    %258 = vmatprep.subr.mxu0 0.0
    %259 = vmatpush1.msra.mxu0 0.0
    %260 = vmatprep.subr.mxu0 0.0
    %261 = vmatpush1.msra.mxu0 0.0
    %262 = vmatprep.subr.mxu0 0.0
    %263 = vmatpush1.msra.mxu0 0.0
    %264 = vmatprep.subr.mxu0 0.0
    %265 = vmatpush1.msra.mxu0 0.0
    %266 = vmatprep.subr.mxu0 0.0
    %267 = vmatpush1.msra.mxu0 0.0
    %268 = vmatprep.subr.mxu0 0.0
    %269 = vmatpush1.msra.mxu0 0.0
    %270 = vmatprep.subr.mxu0 0.0
    %271 = vmatpush1.msra.mxu0 0.0
    %272 = vmatprep.subr.mxu0 0.0
    %273 = vmatpush1.msra.mxu0 0.0
    %274 = vmatprep.subr.mxu0 0.0
    %275 = vmatpush1.msra.mxu0 0.0
    %276 = vmatprep.subr.mxu0 0.0
    %277 = vmatpush1.msra.mxu0 0.0
    %278 = vmatprep.subr.mxu0 0.0
    %279 = vmatpush1.msra.mxu0 0.0
    %280 = vmatprep.mubr.f32.mxu0 0.0
    %281 = vmatmul.mubr.f32.gmra.mrb[0].mxu0 %v143
    %v282 = vpop.f32.mrb[0].mxu0
    %v283 = vadd.f32 0.0, %v282
    %v284 = vpop.f32.mrb[0].mxu0
    %v285 = vadd.f32 0.0, %v284
    %286 = vdwg.mxu0
    %v287 = vmax.f32 %v212, 0.0
    %v288 = vmax.f32 %v214, 0.0
    %v289 = vmax.f32 %v283, 0.0
    %v290 = vmax.f32 %v285, 0.0
    %v291 = vld [vmem:[%s2] sm:$0xff]
    %293 = vset.pattern.permute.xlu0 0
    %294 = vperm.xlu0 %293, %v291
    %v295 = vpop.permute.xlu0 %294
    %v297 = vmul.f32 %v287, %v295
    %v298 = vmul.f32 %v288, %v295
    %v299 = vmul.f32 %v289, %v295
    %v300 = vmul.f32 %v290, %v295
    %301 = vset.pattern.permute.xlu0 1
    %302 = vperm.xlu0 %301, %v291
    %v303 = vpop.permute.xlu0 %302
    %v305 = vadd.f32 %v297, %v303
    %v306 = vadd.f32 %v298, %v303
    %v307 = vadd.f32 %v299, %v303
    %v308 = vadd.f32 %v300, %v303
    %309 = vst [vmem:[#allocation5] sm:$0xff] %v305
    %310 = vst [vmem:[#allocation5 + $0x8] sm:$0xff] %v306
    %s311 = scalar_lea.vmem [#allocation5], 16
    %312 = vst [vmem:[%s311] sm:$0xff] %v307
    %313 = vst [vmem:[%s311 + $0x8] sm:$0xff] %v308
    // Predicated region
    $region18: #{tpu_custom_call.1} parent=1 // pred_check
      _
    $region19: #{tpu_custom_call.1} parent=1 // pred_check_branch
      %315 = sbr.rel (0) target = $region21
    $region20: #{tpu_custom_call.1} parent=1 // pred_region
      %s317 = ssub.s32 512, 512
      %318 = vsyncadd [#allocation4], %s317
      %s319 = sshll.u32 [#allocation5], 4
      %s320 = int_to_ptr.vmem [resolvable:$true] %s319
      %325 = dma.vmem_to_hbm [thread:$0]  %s320, 512, %s3, [#allocation4], 256, 256, 16
    $region21: #{tpu_custom_call.1} parent=1 // pred_fallthru
      _
    // Predicated region
    $region22: #{tpu_custom_call.1} parent=1 // pred_check
      _
    $region23: #{tpu_custom_call.1} parent=1 // pred_check_branch
      %327 = sbr.rel (0) target = $region25
    $region24: #{tpu_custom_call.1} parent=1 // pred_region
      %328 = dma.done [#allocation4], 512
    $region25: #{tpu_custom_call.1} parent=1 // pred_fallthru
      _
    %329 = vsyncpa [#allocation3], 1
    %330 = vsyncpa [#allocation4], 1

</llo_original>
